<compile_context>
chip_gen: v7x
topology: tpu7x:2x2x1
jax: 0.10.0
libtpu: 0.0.40
codegen_flags: <defaults>
</compile_context>

<pallas_src>
import math

import jax
import jax.numpy as jnp
import numpy as np
from jax.experimental import pallas as pl
from jax.experimental.pallas import tpu as pltpu


_SQRT_2_OVER_PI = math.sqrt(2.0 / math.pi)
_LANE = 128


def _round_up(v, m):
    return (v + m - 1) // m * m


def _gelu_tanh(x):
    # tanh-approximate GELU (tanh runs on the EUP slot -> essentially free).
    # TODO(synk): PyTorch F.gelu default is the exact erf formulation; the tanh
    # approximation deviates by <~1e-3 absolute and is used here because exact
    # erf has no robust Mosaic lowering.
    return 0.5 * x * (1.0 + jnp.tanh(_SQRT_2_OVER_PI * (x + 0.044715 * x * x * x)))


def _make_kernel(gelu_dtype):
    """Fused  y = (gelu(x @ w1t + b1) @ w2t) + b2  with a hidden-chunk axis."""

    def kernel(x_ref, w1_ref, b1_ref, w2_ref, b2_ref, o_ref, acc_ref):
        # x_ref : (bm, d_in)         w1_ref: (d_in, tk)     b1_ref: (1, tk)
        # w2_ref: (tk, d_out_p)      b2_ref: (1, d_out_p)
        # o_ref : (bm, d_out_p)      acc_ref: (bm, d_out_p) f32 scratch
        k = pl.program_id(1)

        @pl.when(k == 0)
        def _init():
            acc_ref[...] = jnp.zeros_like(acc_ref)

        x = x_ref[...].astype(w1_ref.dtype)           # mirrors x.type(layer1.weight.dtype)
        h = jnp.dot(x, w1_ref[...], preferred_element_type=jnp.float32) + b1_ref[...]
        # bf16 GELU on bf16 layers (v6e/v7x native); f32 otherwise.
        # NOTE: on v5e (no bf16 VPU/EUP) prefer f32 params so this stays f32.
        h = _gelu_tanh(h.astype(gelu_dtype))
        acc_ref[...] += jnp.dot(h.astype(w2_ref.dtype), w2_ref[...],
                                preferred_element_type=jnp.float32)

        @pl.when(k == pl.num_programs(1) - 1)
        def _finalize():
            o_ref[...] = (acc_ref[...] + b2_ref[...]).astype(o_ref.dtype)

    return kernel


def prepare_nonlinear_params(w1, b1, w2, b2):
    """One-time conversion from PyTorch nn.Linear layout to the kernel layout.

    w1: (hidden, d_in), b1: (hidden,)   -- layer1
    w2: (d_out, hidden), b2: (d_out,)   -- layer2

    Hoists the transposes / reshapes / d_out lane-padding out of the per-call
    path (store these in the model pytree and reuse every forward).
    """
    hidden, d_in = w1.shape
    d_out, hidden2 = w2.shape
    assert hidden2 == hidden, "w2 shape mismatch"

    d_out_p = _round_up(d_out, _LANE)               # lane-dense output stores
    w1t = jnp.asarray(w1).T                         # (d_in, hidden)  hidden on lanes
    w2t = jnp.asarray(w2).T                         # (hidden, d_out) d_out on lanes
    b1r = jnp.asarray(b1).reshape(1, hidden)
    b2r = jnp.asarray(b2).reshape(1, d_out)
    if d_out_p != d_out:
        w2t = jnp.pad(w2t, ((0, 0), (0, d_out_p - d_out)))
        b2r = jnp.pad(b2r, ((0, 0), (0, d_out_p - d_out)))
    return {"w1t": w1t, "b1": b1r, "w2t": w2t, "b2": b2r, "d_out": d_out}


def _vmem_needed(bm, d_in, tk, d_out_p, x_bytes, p_bytes, nk):
    wbuf = 1 if nk == 1 else 2                      # weight-chunk buffering depth
    weights = wbuf * (d_in * tk + tk * d_out_p + tk + d_out_p) * p_bytes
    stream = 2 * bm * d_in * x_bytes + 2 * bm * d_out_p * p_bytes
    scratch = bm * d_out_p * 4
    interim = bm * tk * 4                           # (bm, tk) f32 intermediate h
    return weights + stream + scratch + interim


def nonlinear_forward(x, params, *, block_m=512):
    """Fused NonLinear forward.

    x      : (..., d_in)
    params : output of prepare_nonlinear_params()
    returns: (..., d_out) in the layer dtype.
    """
    w1t, b1, w2t, b2 = params["w1t"], params["b1"], params["w2t"], params["b2"]
    d_out = params["d_out"]
    d_in, hidden = w1t.shape
    hidden2, d_out_p = w2t.shape
    assert hidden2 == hidden and x.shape[-1] == d_in

    lead = x.shape[:-1]
    x2 = x.reshape(-1, d_in)
    m = x2.shape[0]

    p_bytes = jnp.dtype(w1t.dtype).itemsize
    x_bytes = jnp.dtype(x2.dtype).itemsize
    # Native sublane multiple for the narrowest streamed dtype (8/16/32).
    sub = max(8 * (4 // x_bytes), 8 * (4 // p_bytes))

    bm = min(_round_up(block_m, sub), _round_up(m, sub))
    mt = pl.cdiv(m, bm)
    if mt == 1 and m >= 256:
        # Give both v7x TensorCores a row tile (no-op cost on single-TC chips).
        bm = _round_up(pl.cdiv(m, 2), sub)
        mt = pl.cdiv(m, bm)

    # VMEM budget: physical capacity minus headroom (fallback 64 MiB = v7x).
    try:
        phys = int(pltpu.get_tpu_info().vmem_capacity_bytes)
    except Exception:  # pragma: no cover - conservative fallback
        phys = 64 << 20
    cap = phys - (16 << 20)

    # Hidden-dim tiling fallback: stream weight chunks + accumulate when the
    # fully-resident layout does not fit the budget (typically only v7x).
    nk, tk = 1, hidden
    if (_vmem_needed(bm, d_in, tk, d_out_p, x_bytes, p_bytes, 1) > cap
            and hidden % _LANE == 0):
        for cand in range(2, hidden // _LANE + 1):
            if hidden % cand or (hidden // cand) % _LANE:
                continue
            nk, tk = cand, hidden // cand
            if _vmem_needed(bm, d_in, tk, d_out_p, x_bytes, p_bytes, nk) <= cap:
                break

    needed = _vmem_needed(bm, d_in, tk, d_out_p, x_bytes, p_bytes, nk)
    vmem_limit = int(min(cap, max(needed + needed // 4 + (4 << 20), 32 << 20)))

    # Constant-index operands get a single buffer; streamed hidden chunks keep 2.
    res_buf = pl.Buffered(1) if nk == 1 else pl.Buffered(2)

    cost = pl.CostEstimate(
        flops=2 * m * hidden * (d_in + d_out_p),
        transcendentals=m * hidden,
        bytes_accessed=(m * d_in * x_bytes
                        + (d_in * hidden + hidden * d_out_p + hidden + d_out_p) * p_bytes
                        + m * d_out_p * p_bytes),
    )

    gelu_dtype = w1t.dtype if w1t.dtype == jnp.bfloat16 else jnp.float32

    out = pl.pallas_call(
        _make_kernel(gelu_dtype),
        out_shape=jax.ShapeDtypeStruct((m, d_out_p), w1t.dtype),
        grid_spec=pltpu.PrefetchScalarGridSpec(
            num_scalar_prefetch=0,
            grid=(mt, nk),
            in_specs=[
                pl.BlockSpec((bm, d_in), lambda i, k: (i, 0)),               # streamed rows
                pl.BlockSpec((d_in, tk), lambda i, k: (0, k),
                             pipeline_mode=res_buf),                          # w1 (resident/chunked)
                pl.BlockSpec((1, tk), lambda i, k: (0, k),
                             pipeline_mode=res_buf),                          # b1
                pl.BlockSpec((tk, d_out_p), lambda i, k: (k, 0),
                             pipeline_mode=res_buf),                          # w2
                pl.BlockSpec((1, d_out_p), lambda i, k: (0, 0),
                             pipeline_mode=pl.Buffered(1)),                   # b2 (always resident)
            ],
            out_specs=pl.BlockSpec((bm, d_out_p), lambda i, k: (i, 0)),
            scratch_shapes=[pltpu.VMEM((bm, d_out_p), jnp.float32)],
        ),
        compiler_params=pltpu.CompilerParams(
            dimension_semantics=("parallel", "arbitrary"),
            vmem_limit_bytes=vmem_limit,
        ),
        cost_estimate=cost,
    )(x2, w1t, b1, w2t, b2)

    if d_out_p != d_out:
        out = out[:, :d_out]
    return out.reshape(*lead, d_out)


def _reference(x, w1, b1, w2, b2):
    # Pure-JAX reference (same GELU formulation as the kernel).
    h = jnp.dot(x, w1.T, precision=jax.lax.Precision.HIGHEST) + b1
    h = _gelu_tanh(h)
    return jnp.dot(h, w2.T, precision=jax.lax.Precision.HIGHEST) + b2


if __name__ == "__main__":
    # Small deterministic setup: batch=2, seq=8, d_in=32, hidden=64, d_out=32.
    key = jax.random.PRNGKey(0)
    k_x, k_w1, k_b1, k_w2, k_b2 = jax.random.split(key, 5)

    batch, seq, d_in, hidden, d_out = 2, 8, 32, 64, 32
    x = jax.random.normal(k_x, (batch, seq, d_in), jnp.float32)

    # Random non-degenerate weights (the module's 'final' init zeroes layer2,
    # which would make the test trivial; the kernel handles arbitrary weights).
    w1 = (2.0 / d_in) ** 0.5 * jax.random.normal(k_w1, (hidden, d_in), jnp.float32)
    b1 = 0.1 * jax.random.normal(k_b1, (hidden,), jnp.float32)
    w2 = (1.0 / hidden) ** 0.5 * jax.random.normal(k_w2, (d_out, hidden), jnp.float32)
    b2 = 0.1 * jax.random.normal(k_b2, (d_out,), jnp.float32)

    params = prepare_nonlinear_params(w1, b1, w2, b2)   # one-time layout prep
    out = nonlinear_forward(x, params)
    out = jax.block_until_ready(out)

    ref = _reference(x, w1, b1, w2, b2)
    np.testing.assert_allclose(np.asarray(out), np.asarray(ref), rtol=1e-4, atol=1e-4)

    print("KERNEL_OK")
</pallas_src>

<mosaic_0001>
module attributes {stable_mosaic.version = 11 : i64} {
  func.func @kernel(%arg0: i32, %arg1: i32, %arg2: memref<16x32xf32, #tpu.memory_space<vmem>>, %arg3: memref<32x64xf32, #tpu.memory_space<vmem>>, %arg4: memref<1x64xf32, #tpu.memory_space<vmem>>, %arg5: memref<64x128xf32, #tpu.memory_space<vmem>>, %arg6: memref<1x128xf32, #tpu.memory_space<vmem>>, %arg7: memref<16x128xf32, #tpu.memory_space<vmem>>, %arg8: memref<16x128xf32, #tpu.memory_space<vmem>>) attributes {dimension_semantics = [#tpu.dimension_semantics<parallel>, #tpu.dimension_semantics<arbitrary>], iteration_bounds = array<i64: 1, 1>, scalar_prefetch = 0 : i64, scratch_operands = 1 : i64, tpu.core_type = #tpu.core_type<tc>, window_params = [{transform_indices = @transform_0, window_bounds = array<i64: 16, 32>}, {pipeline_mode = #tpu.pipeline_mode<synchronous>, transform_indices = @transform_1, window_bounds = array<i64: 32, 64>}, {pipeline_mode = #tpu.pipeline_mode<synchronous>, transform_indices = @transform_2, window_bounds = array<i64: 1, 64>}, {pipeline_mode = #tpu.pipeline_mode<synchronous>, transform_indices = @transform_3, window_bounds = array<i64: 64, 128>}, {pipeline_mode = #tpu.pipeline_mode<synchronous>, transform_indices = @transform_4, window_bounds = array<i64: 1, 128>}, {transform_indices = @transform_5, window_bounds = array<i64: 16, 128>}]} {
    %c0_i32 = arith.constant 0 : i32
    %0 = arith.cmpi eq, %arg1, %c0_i32 : i32
    %1 = arith.extui %0 : i1 to i32
    %c0_i32_0 = arith.constant 0 : i32
    %2 = arith.cmpi ne, %1, %c0_i32_0 : i32
    scf.if %2 {
      %cst_19 = arith.constant 0.000000e+00 : f32
      %30 = vector.broadcast %cst_19 : f32 to vector<16x128xf32>
      %c0_20 = arith.constant 0 : index
      %c0_21 = arith.constant 0 : index
      %31 = vector.load %arg8[%c0_20, %c0_21] : memref<16x128xf32, #tpu.memory_space<vmem>>, vector<16x128xf32>
      tpu.vector_store %arg8[%c0_20, %c0_21], %30 {strides = array<i32>} : memref<16x128xf32, #tpu.memory_space<vmem>>, vector<16x128xf32>,
    } else {
    }
    %c0 = arith.constant 0 : index
    %c0_1 = arith.constant 0 : index
    %3 = vector.load %arg2[%c0, %c0_1] : memref<16x32xf32, #tpu.memory_space<vmem>>, vector<16x32xf32>
    %c0_2 = arith.constant 0 : index
    %c0_3 = arith.constant 0 : index
    %4 = vector.load %arg3[%c0_2, %c0_3] : memref<32x64xf32, #tpu.memory_space<vmem>>, vector<32x64xf32>
    %cst = arith.constant dense<0.000000e+00> : vector<16x64xf32>
    %5 = tpu.matmul %3, %4, %cst {dimension_numbers = #tpu.dot_dimension_numbers<[1], [0], [0], [1], [0, 0, 1, 1], [], []>} : vector<16x32xf32>, vector<32x64xf32>, vector<16x64xf32> -> vector<16x64xf32>
    %c0_4 = arith.constant 0 : index
    %c0_5 = arith.constant 0 : index
    %6 = vector.load %arg4[%c0_4, %c0_5] : memref<1x64xf32, #tpu.memory_space<vmem>>, vector<1x64xf32>
    %7 = vector.broadcast %6 : vector<1x64xf32> to vector<16x64xf32>
    %8 = arith.addf %5, %7 : vector<16x64xf32>
    %cst_6 = arith.constant 5.000000e-01 : f32
    %9 = vector.broadcast %cst_6 : f32 to vector<16x64xf32>
    %10 = arith.mulf %9, %8 : vector<16x64xf32>
    %cst_7 = arith.constant 4.471500e-02 : f32
    %11 = vector.broadcast %cst_7 : f32 to vector<16x64xf32>
    %12 = arith.mulf %11, %8 : vector<16x64xf32>
    %13 = arith.mulf %12, %8 : vector<16x64xf32>
    %14 = arith.mulf %13, %8 : vector<16x64xf32>
    %15 = arith.addf %8, %14 : vector<16x64xf32>
    %cst_8 = arith.constant 0.797884583 : f32
    %16 = vector.broadcast %cst_8 : f32 to vector<16x64xf32>
    %17 = arith.mulf %16, %15 : vector<16x64xf32>
    %18 = math.tanh %17 : vector<16x64xf32>
    %cst_9 = arith.constant 1.000000e+00 : f32
    %19 = vector.broadcast %cst_9 : f32 to vector<16x64xf32>
    %20 = arith.addf %19, %18 : vector<16x64xf32>
    %21 = arith.mulf %10, %20 : vector<16x64xf32>
    %c0_10 = arith.constant 0 : index
    %c0_11 = arith.constant 0 : index
    %22 = vector.load %arg8[%c0_10, %c0_11] : memref<16x128xf32, #tpu.memory_space<vmem>>, vector<16x128xf32>
    %c0_12 = arith.constant 0 : index
    %c0_13 = arith.constant 0 : index
    %23 = vector.load %arg5[%c0_12, %c0_13] : memref<64x128xf32, #tpu.memory_space<vmem>>, vector<64x128xf32>
    %cst_14 = arith.constant dense<0.000000e+00> : vector<16x128xf32>
    %24 = tpu.matmul %21, %23, %cst_14 {dimension_numbers = #tpu.dot_dimension_numbers<[1], [0], [0], [1], [0, 0, 1, 1], [], []>} : vector<16x64xf32>, vector<64x128xf32>, vector<16x128xf32> -> vector<16x128xf32>
    %25 = arith.addf %22, %24 : vector<16x128xf32>
    %c0_15 = arith.constant 0 : index
    %c0_16 = arith.constant 0 : index
    %26 = vector.load %arg8[%c0_15, %c0_16] : memref<16x128xf32, #tpu.memory_space<vmem>>, vector<16x128xf32>
    tpu.vector_store %arg8[%c0_15, %c0_16], %25 {strides = array<i32>} : memref<16x128xf32, #tpu.memory_space<vmem>>, vector<16x128xf32>,
    %c0_i32_17 = arith.constant 0 : i32
    %27 = arith.cmpi eq, %arg1, %c0_i32_17 : i32
    %28 = arith.extui %27 : i1 to i32
    %c0_i32_18 = arith.constant 0 : i32
    %29 = arith.cmpi ne, %28, %c0_i32_18 : i32
    scf.if %29 {
      %c0_19 = arith.constant 0 : index
      %c0_20 = arith.constant 0 : index
      %30 = vector.load %arg8[%c0_19, %c0_20] : memref<16x128xf32, #tpu.memory_space<vmem>>, vector<16x128xf32>
      %c0_21 = arith.constant 0 : index
      %c0_22 = arith.constant 0 : index
      %31 = vector.load %arg6[%c0_21, %c0_22] : memref<1x128xf32, #tpu.memory_space<vmem>>, vector<1x128xf32>
      %32 = vector.broadcast %31 : vector<1x128xf32> to vector<16x128xf32>
      %33 = arith.addf %30, %32 : vector<16x128xf32>
      %c0_23 = arith.constant 0 : index
      %c0_24 = arith.constant 0 : index
      %34 = vector.load %arg7[%c0_23, %c0_24] : memref<16x128xf32, #tpu.memory_space<vmem>>, vector<16x128xf32>
      tpu.vector_store %arg7[%c0_23, %c0_24], %33 {strides = array<i32>} : memref<16x128xf32, #tpu.memory_space<vmem>>, vector<16x128xf32>,
    } else {
    }
    return
  }
  func.func @transform_0(%arg0: i32, %arg1: i32) -> (i32, i32) {
    %c0_i32 = arith.constant 0 : i32
    %c0_i32_0 = arith.constant 0 : i32
    return %arg0, %c0_i32 : i32, i32
  }
  func.func @transform_1(%arg0: i32, %arg1: i32) -> (i32, i32) {
    %c0_i32 = arith.constant 0 : i32
    %c0_i32_0 = arith.constant 0 : i32
    return %c0_i32, %arg1 : i32, i32
  }
  func.func @transform_2(%arg0: i32, %arg1: i32) -> (i32, i32) {
    %c0_i32 = arith.constant 0 : i32
    %c0_i32_0 = arith.constant 0 : i32
    return %c0_i32, %arg1 : i32, i32
  }
  func.func @transform_3(%arg0: i32, %arg1: i32) -> (i32, i32) {
    %c0_i32 = arith.constant 0 : i32
    %c0_i32_0 = arith.constant 0 : i32
    return %arg1, %c0_i32 : i32, i32
  }
  func.func @transform_4(%arg0: i32, %arg1: i32) -> (i32, i32) {
    %c0_i32 = arith.constant 0 : i32
    %c0_i32_0 = arith.constant 0 : i32
    %c0_i32_1 = arith.constant 0 : i32
    return %c0_i32, %c0_i32_0 : i32, i32
  }
  func.func @transform_5(%arg0: i32, %arg1: i32) -> (i32, i32) {
    %c0_i32 = arith.constant 0 : i32
    %c0_i32_0 = arith.constant 0 : i32
    return %arg0, %c0_i32 : i32, i32
  }
}

</mosaic_0001>

<llo_original>
// kernel: tpu_custom_call.1
$region0: #{tpu_custom_call.1}
  #allocation0 [shape = 'u32[]', space=smem, size = 0x4, offset = 0x4, fixed_abs, tag = 'smem constant byte address 0x4 - core index']
  #allocation1 [shape = 'u32[144,128]{1,0:T(1,128)}', space=vmem, size = 0x12000, scoped, tag = 'internal scratch']
  #allocation2 [shape = 'f32[16,128]{1,0:T(8,128)}', space=vmem, size = 0x2000, scoped, tag = 'scratch operand']
  %s0 = inlined_call_operand.hbm [shape: f32[16,32], index: 0, kind: input, shape index: {}]
  %s1 = inlined_call_operand.hbm [shape: f32[32,64], index: 1, kind: input, shape index: {}]
  %s2 = inlined_call_operand.vmem [shape: f32[1,64], index: 2, kind: input, shape index: {}]
  %s3 = inlined_call_operand.hbm [shape: f32[64,128], index: 3, kind: input, shape index: {}]
  %s4 = inlined_call_operand.vmem [shape: f32[1,128], index: 4, kind: input, shape index: {}]
  %s5 = inlined_call_operand.hbm [shape: f32[16,128], index: 5, kind: output, shape index: {}]
  %s6 = sld [smem:[#allocation0]]
  $region50: #{tpu_custom_call.1} parent=0
    _
  %s8 = ssub.s32 1, %s6
  %s9 = scalar_select 0, %s8, %s6
  $region1: #{tpu_custom_call.1} parent=0
    #allocation3 [shape = 'u8[8192]{0}', space=vmem, size = 0x2000, scoped, tag = 'input window, operand 0, single buffered']
    #allocation4 [shape = 's32[1]{0}', space=sflag, size = 0x4, scoped, tag = 'scoped memory for tpu_custom_call.1']
    #allocation5 [shape = 's32[1]{0}', space=sflag, size = 0x4, scoped, tag = 'scoped memory for tpu_custom_call.1']
    #allocation6 [shape = 'u8[16384]{0}', space=vmem, size = 0x4000, scoped, tag = 'input window, operand 1, single buffered']
    #allocation7 [shape = 's32[1]{0}', space=sflag, size = 0x4, scoped, tag = 'scoped memory for tpu_custom_call.1']
    #allocation8 [shape = 'u8[32768]{0}', space=vmem, size = 0x8000, scoped, tag = 'input window, operand 3, single buffered']
    #allocation9 [shape = 'u8[8192]{0}', space=vmem, size = 0x2000, scoped, tag = 'output window, operand 0, single buffered']
    %10 = vsyncpa [#allocation4], 0
    %11 = vsyncpa [#allocation7], 0
    %12 = vsyncpa [#allocation5], 0
    // Predicated region
    $region2: #{tpu_custom_call.1} parent=1 // pred_check
      _
    $region3: #{tpu_custom_call.1} parent=1 // pred_check_branch
      %14 = sbr.rel (0) target = $region5
    $region4: #{tpu_custom_call.1} parent=1 // pred_region
      %s16 = ssub.s32 256, 256
      %17 = vsyncadd [#allocation4], %s16
      %s18 = sshll.u32 [#allocation3], 4
      %s19 = int_to_ptr.vmem [resolvable:$true] %s18
      %24 = dma.hbm_to_vmem [thread:$0]  %s0, 256, %s19, [#allocation4], 128, 128, 8
    $region5: #{tpu_custom_call.1} parent=1 // pred_fallthru
      _
    // Predicated region
    $region6: #{tpu_custom_call.1} parent=1 // pred_check
      _
    $region7: #{tpu_custom_call.1} parent=1 // pred_check_branch
      %26 = sbr.rel (0) target = $region9
    $region8: #{tpu_custom_call.1} parent=1 // pred_region
      %s28 = ssub.s32 512, 512
      %29 = vsyncadd [#allocation7], %s28
      %s30 = sshll.u32 [#allocation6], 4
      %s31 = int_to_ptr.vmem [resolvable:$true] %s30
      %36 = dma.hbm_to_vmem [thread:$0]  %s1, 512, %s31, [#allocation7], 128, 128, 8
    $region9: #{tpu_custom_call.1} parent=1 // pred_fallthru
      _
    // Predicated region
    $region10: #{tpu_custom_call.1} parent=1 // pred_check
      _
    $region11: #{tpu_custom_call.1} parent=1 // pred_check_branch
      %38 = sbr.rel (0) target = $region13
    $region12: #{tpu_custom_call.1} parent=1 // pred_region
      _
    $region13: #{tpu_custom_call.1} parent=1 // pred_fallthru
      _
    // Predicated region
    $region14: #{tpu_custom_call.1} parent=1 // pred_check
      _
    $region15: #{tpu_custom_call.1} parent=1 // pred_check_branch
      %40 = sbr.rel (0) target = $region17
    $region16: #{tpu_custom_call.1} parent=1 // pred_region
      %s42 = ssub.s32 1024, 1024
      %43 = vsyncadd [#allocation7], %s42
      %s44 = sshll.u32 [#allocation8], 4
      %s45 = int_to_ptr.vmem [resolvable:$true] %s44
      %50 = dma.hbm_to_vmem [thread:$0]  %s3, 1024, %s45, [#allocation7], 128, 128, 8
    $region17: #{tpu_custom_call.1} parent=1 // pred_fallthru
      _
    // Predicated region
    $region18: #{tpu_custom_call.1} parent=1 // pred_check
      _
    $region19: #{tpu_custom_call.1} parent=1 // pred_check_branch
      %52 = sbr.rel (0) target = $region21
    $region20: #{tpu_custom_call.1} parent=1 // pred_region
      _
    $region21: #{tpu_custom_call.1} parent=1 // pred_fallthru
      _
    // Predicated region
    $region22: #{tpu_custom_call.1} parent=1 // pred_check
      _
    $region23: #{tpu_custom_call.1} parent=1 // pred_check_branch
      %54 = sbr.rel (0) target = $region25
    $region24: #{tpu_custom_call.1} parent=1 // pred_region
      %55 = dma.done [#allocation4], 256
    $region25: #{tpu_custom_call.1} parent=1 // pred_fallthru
      _
    // Predicated region
    $region26: #{tpu_custom_call.1} parent=1 // pred_check
      _
    $region27: #{tpu_custom_call.1} parent=1 // pred_check_branch
      %57 = sbr.rel (0) target = $region29
    $region28: #{tpu_custom_call.1} parent=1 // pred_region
      %58 = dma.done [#allocation7], 512
    $region29: #{tpu_custom_call.1} parent=1 // pred_fallthru
      _
    // Predicated region
    $region30: #{tpu_custom_call.1} parent=1 // pred_check
      _
    $region31: #{tpu_custom_call.1} parent=1 // pred_check_branch
      %60 = sbr.rel (0) target = $region33
    $region32: #{tpu_custom_call.1} parent=1 // pred_region
      %61 = dma.done [#allocation7], 1024
    $region33: #{tpu_custom_call.1} parent=1 // pred_fallthru
      _
    %p62 = scmp.eq.s32.totalorder 0, 0
    // Predicated region
    $region34: #{tpu_custom_call.1} parent=1 // pred_check
      %p63 = pneg %p62
    $region35: #{tpu_custom_call.1} parent=1 // pred_check_branch
      %65 = sbr.rel (%p63) target = $region37
    $region36: #{tpu_custom_call.1} parent=1 // pred_region
      %66 = vst [vmem:[#allocation2] sm:$0xff] 0.0
      %67 = vst [vmem:[#allocation2 + $0x8] sm:$0xff] 0.0
    $region37: #{tpu_custom_call.1} parent=1 // pred_fallthru
      _
    %v68 = vld [vmem:[#allocation3] sm:$0xff]
    %v69 = vld [vmem:[#allocation3 + $0x8] sm:$0xff]
    %v70 = vld [vmem:[#allocation6] sm:$0xff]
    %v71 = vld [vmem:[#allocation6 + $0x8] sm:$0xff]
    %v72 = vld [vmem:[#allocation6 + $0x10] sm:$0xff]
    %v73 = vld [vmem:[#allocation6 + $0x18] sm:$0xff]
    %v74 = vld [vmem:[%s2] sm:$0x1]
    %v76 = vlaneseq
    %v77 = vshrl.u32 %v76, 7
    %v78 = vsub.s32 0, %v77
    %v79 = vrot.slane %v74, %v78
    %vm81 = vcmask 261120
    %v83 = vsel %vm81, %v68, 0
    %v86 = vsel %vm81, %v69, 0
    %88 = vmatprep.subr.mxu0 0.0
    %89 = vmatpush1.msra.mxu0 %v70
    %90 = vmatprep.subr.mxu0 0.0
    %91 = vmatpush1.msra.mxu0 %v71
    %92 = vmatprep.subr.mxu0 0.0
    %93 = vmatpush1.msra.mxu0 %v72
    %94 = vmatprep.subr.mxu0 0.0
    %95 = vmatpush1.msra.mxu0 %v73
    %96 = vmatprep.subr.mxu0 0.0
    %97 = vmatpush1.msra.mxu0 0.0
    %98 = vmatprep.subr.mxu0 0.0
    %99 = vmatpush1.msra.mxu0 0.0
    %100 = vmatprep.subr.mxu0 0.0
    %101 = vmatpush1.msra.mxu0 0.0
    %102 = vmatprep.subr.mxu0 0.0
    %103 = vmatpush1.msra.mxu0 0.0
    %104 = vmatprep.subr.mxu0 0.0
    %105 = vmatpush1.msra.mxu0 0.0
    %106 = vmatprep.subr.mxu0 0.0
    %107 = vmatpush1.msra.mxu0 0.0
    %108 = vmatprep.subr.mxu0 0.0
    %109 = vmatpush1.msra.mxu0 0.0
    %110 = vmatprep.subr.mxu0 0.0
    %111 = vmatpush1.msra.mxu0 0.0
    %112 = vmatprep.subr.mxu0 0.0
    %113 = vmatpush1.msra.mxu0 0.0
    %114 = vmatprep.subr.mxu0 0.0
    %115 = vmatpush1.msra.mxu0 0.0
    %116 = vmatprep.subr.mxu0 0.0
    %117 = vmatpush1.msra.mxu0 0.0
    %118 = vmatprep.subr.mxu0 0.0
    %119 = vmatpush1.msra.mxu0 0.0
    %120 = vmatprep.subr.mxu0 0.0
    %121 = vmatpush1.msra.mxu0 0.0
    %122 = vmatprep.subr.mxu0 0.0
    %123 = vmatpush1.msra.mxu0 0.0
    %124 = vmatprep.subr.mxu0 0.0
    %125 = vmatpush1.msra.mxu0 0.0
    %126 = vmatprep.subr.mxu0 0.0
    %127 = vmatpush1.msra.mxu0 0.0
    %128 = vmatprep.subr.mxu0 0.0
    %129 = vmatpush1.msra.mxu0 0.0
    %130 = vmatprep.subr.mxu0 0.0
    %131 = vmatpush1.msra.mxu0 0.0
    %132 = vmatprep.subr.mxu0 0.0
    %133 = vmatpush1.msra.mxu0 0.0
    %134 = vmatprep.subr.mxu0 0.0
    %135 = vmatpush1.msra.mxu0 0.0
    %136 = vmatprep.subr.mxu0 0.0
    %137 = vmatpush1.msra.mxu0 0.0
    %138 = vmatprep.subr.mxu0 0.0
    %139 = vmatpush1.msra.mxu0 0.0
    %140 = vmatprep.subr.mxu0 0.0
    %141 = vmatpush1.msra.mxu0 0.0
    %142 = vmatprep.subr.mxu0 0.0
    %143 = vmatpush1.msra.mxu0 0.0
    %144 = vmatprep.subr.mxu0 0.0
    %145 = vmatpush1.msra.mxu0 0.0
    %146 = vmatprep.subr.mxu0 0.0
    %147 = vmatpush1.msra.mxu0 0.0
    %148 = vmatprep.subr.mxu0 0.0
    %149 = vmatpush1.msra.mxu0 0.0
    %150 = vmatprep.subr.mxu0 0.0
    %151 = vmatpush1.msra.mxu0 0.0
    %152 = vmatprep.mubr.f32.mxu0 0.0
    %153 = vmatmul.mubr.f32.gmra.mrb[0].mxu0 %v83
    %v154 = vpop.f32.mrb[0].mxu0
    %v155 = vadd.f32 %v79, %v154
    %v156 = vpop.f32.mrb[0].mxu0
    %157 = vmatprep.mubr.f32.mxu0 0.0
    %158 = vmatmul.mubr.f32.gmra.mrb[0].mxu0 %v86
    %v159 = vpop.f32.mrb[0].mxu0
    %v160 = vadd.f32 %v79, %v159
    %v161 = vpop.f32.mrb[0].mxu0
    %162 = vdwg.mxu0
    %v163 = vmul.f32 %v155, 0.5
    %v164 = vmul.f32 %v160, 0.5
    %v165 = vmul.f32 %v155, 0.044715
    %v166 = vmul.f32 %v160, 0.044715
    %v167 = vmul.f32 %v165, %v155
    %v168 = vmul.f32 %v166, %v160
    %v169 = vmul.f32 %v167, %v155
    %v170 = vmul.f32 %v168, %v160
    %v171 = vadd.f32 %v155, %v169
    %v172 = vadd.f32 %v160, %v170
    %v173 = vmul.f32 %v171, 0.7978846
    %v174 = vmul.f32 %v172, 0.7978846
    %v175 = vtanh.pop %v173
    %v176 = vtanh.pop %v174
    %v177 = vadd.f32 %v175, 1.0
    %v178 = vadd.f32 %v176, 1.0
    %v179 = vmul.f32 %v163, %v177
    %v180 = vmul.f32 %v164, %v178
    %v181 = vld [vmem:[#allocation2] sm:$0xff]
    %v182 = vld [vmem:[#allocation2 + $0x8] sm:$0xff]
    %v183 = vld [vmem:[#allocation8] sm:$0xff]
    %v184 = vld [vmem:[#allocation8 + $0x8] sm:$0xff]
    %v185 = vld [vmem:[#allocation8 + $0x10] sm:$0xff]
    %v186 = vld [vmem:[#allocation8 + $0x18] sm:$0xff]
    %v187 = vld [vmem:[#allocation8 + $0x20] sm:$0xff]
    %v188 = vld [vmem:[#allocation8 + $0x28] sm:$0xff]
    %v189 = vld [vmem:[#allocation8 + $0x30] sm:$0xff]
    %v190 = vld [vmem:[#allocation8 + $0x38] sm:$0xff]
    %vm191 = vcmask 523264
    %v193 = vsel %vm191, %v179, 0
    %v196 = vsel %vm191, %v180, 0
    %198 = vmatprep.subr.mxu0 0.0
    %199 = vmatpush1.msra.mxu0 %v183
    %200 = vmatprep.subr.mxu0 0.0
    %201 = vmatpush1.msra.mxu0 %v184
    %202 = vmatprep.subr.mxu0 0.0
    %203 = vmatpush1.msra.mxu0 %v185
    %204 = vmatprep.subr.mxu0 0.0
    %205 = vmatpush1.msra.mxu0 %v186
    %206 = vmatprep.subr.mxu0 0.0
    %207 = vmatpush1.msra.mxu0 %v187
    %208 = vmatprep.subr.mxu0 0.0
    %209 = vmatpush1.msra.mxu0 %v188
    %210 = vmatprep.subr.mxu0 0.0
    %211 = vmatpush1.msra.mxu0 %v189
    %212 = vmatprep.subr.mxu0 0.0
    %213 = vmatpush1.msra.mxu0 %v190
    %214 = vmatprep.subr.mxu0 0.0
    %215 = vmatpush1.msra.mxu0 0.0
    %216 = vmatprep.subr.mxu0 0.0
    %217 = vmatpush1.msra.mxu0 0.0
    %218 = vmatprep.subr.mxu0 0.0
    %219 = vmatpush1.msra.mxu0 0.0
    %220 = vmatprep.subr.mxu0 0.0
    %221 = vmatpush1.msra.mxu0 0.0
    %222 = vmatprep.subr.mxu0 0.0
    %223 = vmatpush1.msra.mxu0 0.0
    %224 = vmatprep.subr.mxu0 0.0
    %225 = vmatpush1.msra.mxu0 0.0
    %226 = vmatprep.subr.mxu0 0.0
    %227 = vmatpush1.msra.mxu0 0.0
    %228 = vmatprep.subr.mxu0 0.0
    %229 = vmatpush1.msra.mxu0 0.0
    %230 = vmatprep.subr.mxu0 0.0
    %231 = vmatpush1.msra.mxu0 0.0
    %232 = vmatprep.subr.mxu0 0.0
    %233 = vmatpush1.msra.mxu0 0.0
    %234 = vmatprep.subr.mxu0 0.0
    %235 = vmatpush1.msra.mxu0 0.0
    %236 = vmatprep.subr.mxu0 0.0
    %237 = vmatpush1.msra.mxu0 0.0
    %238 = vmatprep.subr.mxu0 0.0
    %239 = vmatpush1.msra.mxu0 0.0
    %240 = vmatprep.subr.mxu0 0.0
    %241 = vmatpush1.msra.mxu0 0.0
    %242 = vmatprep.subr.mxu0 0.0
    %243 = vmatpush1.msra.mxu0 0.0
    %244 = vmatprep.subr.mxu0 0.0
    %245 = vmatpush1.msra.mxu0 0.0
    %246 = vmatprep.subr.mxu0 0.0
    %247 = vmatpush1.msra.mxu0 0.0
    %248 = vmatprep.subr.mxu0 0.0
    %249 = vmatpush1.msra.mxu0 0.0
    %250 = vmatprep.subr.mxu0 0.0
    %251 = vmatpush1.msra.mxu0 0.0
    %252 = vmatprep.subr.mxu0 0.0
    %253 = vmatpush1.msra.mxu0 0.0
    %254 = vmatprep.subr.mxu0 0.0
    %255 = vmatpush1.msra.mxu0 0.0
    %256 = vmatprep.subr.mxu0 0.0
    %257 = vmatpush1.msra.mxu0 0.0
    %258 = vmatprep.subr.mxu0 0.0
    %259 = vmatpush1.msra.mxu0 0.0
    %260 = vmatprep.subr.mxu0 0.0
    %261 = vmatpush1.msra.mxu0 0.0
    %262 = vmatprep.mubr.f32.mxu0 0.0
    %263 = vmatmul.mubr.f32.gmra.mrb[0].mxu0 %v193
    %v264 = vpop.f32.mrb[0].mxu0
    %v265 = vadd.f32 0.0, %v264
    %v266 = vpop.f32.mrb[0].mxu0
    %267 = vmatprep.mubr.f32.mxu0 0.0
    %268 = vmatmul.mubr.f32.gmra.mrb[0].mxu0 %v196
    %v269 = vpop.f32.mrb[0].mxu0
    %v270 = vadd.f32 0.0, %v269
    %v271 = vpop.f32.mrb[0].mxu0
    %272 = vdwg.mxu0
    %v273 = vadd.f32 %v181, %v265
    %v274 = vadd.f32 %v182, %v270
    %275 = vst [vmem:[#allocation2] sm:$0xff] %v273
    %276 = vst [vmem:[#allocation2 + $0x8] sm:$0xff] %v274
    // Predicated region
    $region38: #{tpu_custom_call.1} parent=1 // pred_check
      %p277 = pneg %p62
    $region39: #{tpu_custom_call.1} parent=1 // pred_check_branch
      %279 = sbr.rel (%p277) target = $region41
    $region40: #{tpu_custom_call.1} parent=1 // pred_region
      %v280 = vld [vmem:[#allocation2] sm:$0xff]
      %v281 = vld [vmem:[#allocation2 + $0x8] sm:$0xff]
      %v282 = vld [vmem:[%s4] sm:$0x1]
      %v284 = vlaneseq
      %v285 = vshrl.u32 %v284, 7
      %v286 = vsub.s32 0, %v285
      %v287 = vrot.slane %v282, %v286
      %v289 = vadd.f32 %v280, %v287
      %v290 = vadd.f32 %v281, %v287
      %291 = vst [vmem:[#allocation9] sm:$0xff] %v289
      %292 = vst [vmem:[#allocation9 + $0x8] sm:$0xff] %v290
    $region41: #{tpu_custom_call.1} parent=1 // pred_fallthru
      _
    // Predicated region
    $region42: #{tpu_custom_call.1} parent=1 // pred_check
      _
    $region43: #{tpu_custom_call.1} parent=1 // pred_check_branch
      %294 = sbr.rel (0) target = $region45
    $region44: #{tpu_custom_call.1} parent=1 // pred_region
      %s296 = ssub.s32 256, 256
      %297 = vsyncadd [#allocation5], %s296
      %s298 = sshll.u32 [#allocation9], 4
      %s299 = int_to_ptr.vmem [resolvable:$true] %s298
      %304 = dma.vmem_to_hbm [thread:$0]  %s299, 256, %s5, [#allocation5], 128, 128, 8
    $region45: #{tpu_custom_call.1} parent=1 // pred_fallthru
      _
    // Predicated region
    $region46: #{tpu_custom_call.1} parent=1 // pred_check
      _
    $region47: #{tpu_custom_call.1} parent=1 // pred_check_branch
      %306 = sbr.rel (0) target = $region49
    $region48: #{tpu_custom_call.1} parent=1 // pred_region
      %307 = dma.done [#allocation5], 256
    $region49: #{tpu_custom_call.1} parent=1 // pred_fallthru
      _
    %308 = vsyncpa [#allocation4], 1
    %309 = vsyncpa [#allocation7], 1
    %310 = vsyncpa [#allocation5], 1

</llo_original>
